<compile_context>
chip_gen: v7x
topology: tpu7x:2x2x1
jax: 0.10.0
libtpu: 0.0.40
codegen_flags: <defaults>
</compile_context>

<pallas_src>
import jax
import jax.numpy as jnp
from jax import lax
from jax.experimental import pallas as pl
from jax.experimental.pallas import tpu as pltpu


def _round_up(x, m):
    return ((x + m - 1) // m) * m


def prolm_output_kernel(x_ref, w_ref, res_ref, o_ref, acc_ref):
    # x_ref:   (tm, tk)  activation tile
    # w_ref:   (tn, tk)  dense weight tile, native torch [out, in] layout
    # res_ref: (tm, tn)  residual (input_tensor) tile
    # o_ref:   (tm, tn)  output tile
    # acc_ref: (tm, tn)  f32 accumulator scratch, resident across the K axis
    k = pl.program_id(2)

    @pl.when(k == 0)
    def _():
        acc_ref[...] = jnp.zeros_like(acc_ref)

    # x @ W^T without transposing W in HBM: contract dim 1 of both operands.
    # Operands stay in their stored dtype; accumulate in f32 on the MXU.
    acc_ref[...] += lax.dot_general(
        x_ref[...], w_ref[...],
        dimension_numbers=(((1,), (1,)), ((), ())),
        preferred_element_type=jnp.float32)

    @pl.when(k == pl.num_programs(2) - 1)
    def _():
        # Dropout is identity in eval mode; add residual and write the tile.
        o_ref[...] = (acc_ref[...] + res_ref[...].astype(jnp.float32)
                      ).astype(o_ref.dtype)


def prolm_output(hidden_states, input_tensor, w_dense, *,
                 tm=256, tn=256, tk=512):
    """hidden_states: [B, S, I]; input_tensor: [B, S, H];
    w_dense: [H, I] (torch Linear layout, out x in). Returns [B, S, H]."""
    B, S, I = hidden_states.shape
    H = input_tensor.shape[-1]
    assert w_dense.shape == (H, I)
    N = B * S

    # Clamp tile sizes to the (padded-up) problem dims while respecting the
    # TPU (8, 128) layout constraint, then zero-pad so the grid tiles exactly.
    tm = min(tm, _round_up(N, 8))
    tn = min(tn, _round_up(H, 128))
    tk = min(tk, _round_up(I, 128))
    Np, Hp, Ip = _round_up(N, tm), _round_up(H, tn), _round_up(I, tk)

    x2d = hidden_states.reshape(N, I)
    r2d = input_tensor.reshape(N, H)
    w = w_dense
    if (Np, Ip) != (N, I):
        x2d = jnp.pad(x2d, ((0, Np - N), (0, Ip - I)))
    if (Hp, Ip) != (H, I):
        w = jnp.pad(w, ((0, Hp - H), (0, Ip - I)))
    if (Np, Hp) != (N, H):
        r2d = jnp.pad(r2d, ((0, Np - N), (0, Hp - H)))

    out_dtype = input_tensor.dtype
    grid = (Np // tm, Hp // tn, Ip // tk)

    cost = pl.CostEstimate(
        flops=2 * Np * Hp * Ip,
        transcendentals=0,
        bytes_accessed=(x2d.size * x2d.dtype.itemsize
                        + w.size * w.dtype.itemsize
                        + r2d.size * r2d.dtype.itemsize
                        + Np * Hp * jnp.dtype(out_dtype).itemsize))

    out2d = pl.pallas_call(
        prolm_output_kernel,
        out_shape=jax.ShapeDtypeStruct((Np, Hp), out_dtype),
        grid_spec=pltpu.PrefetchScalarGridSpec(
            num_scalar_prefetch=0,
            grid=grid,
            in_specs=[
                pl.BlockSpec((tm, tk), lambda i, j, k: (i, k)),   # activations
                pl.BlockSpec((tn, tk), lambda i, j, k: (j, k)),   # weight [out,in]
                pl.BlockSpec((tm, tn), lambda i, j, k: (i, j)),   # residual
            ],
            out_specs=pl.BlockSpec((tm, tn), lambda i, j, k: (i, j)),
            scratch_shapes=[pltpu.VMEM((tm, tn), jnp.float32)],
        ),
        compiler_params=pltpu.CompilerParams(
            dimension_semantics=("parallel", "parallel", "arbitrary")),
        cost_estimate=cost,
    )(x2d, w, r2d)

    return out2d[:N, :H].reshape(B, S, H)


def prolm_output_ref(hidden_states, input_tensor, w_dense):
    h = jnp.einsum('bsi,hi->bsh',
                   hidden_states.astype(jnp.float32),
                   w_dense.astype(jnp.float32))
    return (h + input_tensor.astype(jnp.float32)).astype(input_tensor.dtype)


if __name__ == "__main__":
    # small config: batch=2, seq=8, intermediate_size=64, hidden_size=32
    B, S, I, H = 2, 8, 64, 32

    key = jax.random.PRNGKey(0)
    k0, k1, k2 = jax.random.split(key, 3)

    hidden_states = jax.random.normal(k0, (B, S, I), dtype=jnp.float32)
    input_tensor = jax.random.normal(k1, (B, S, H), dtype=jnp.float32)
    w_dense = jax.random.normal(k2, (H, I), dtype=jnp.float32) * 0.05

    out = prolm_output(hidden_states, input_tensor, w_dense)
    out = jax.block_until_ready(out)

    ref = prolm_output_ref(hidden_states, input_tensor, w_dense)
    assert out.shape == (B, S, H)
    err = jnp.max(jnp.abs(out - ref))
    assert jnp.allclose(out, ref, atol=1e-3, rtol=1e-3), f"max abs err = {err}"

    print("KERNEL_OK")
</pallas_src>

<mosaic_0001>
module attributes {stable_mosaic.version = 11 : i64} {
  func.func @prolm_output_kernel(%arg0: i32, %arg1: i32, %arg2: i32, %arg3: memref<16x128xf32, #tpu.memory_space<vmem>>, %arg4: memref<128x128xf32, #tpu.memory_space<vmem>>, %arg5: memref<16x128xf32, #tpu.memory_space<vmem>>, %arg6: memref<16x128xf32, #tpu.memory_space<vmem>>, %arg7: memref<16x128xf32, #tpu.memory_space<vmem>>) attributes {dimension_semantics = [#tpu.dimension_semantics<parallel>, #tpu.dimension_semantics<parallel>, #tpu.dimension_semantics<arbitrary>], iteration_bounds = array<i64: 1, 1, 1>, scalar_prefetch = 0 : i64, scratch_operands = 1 : i64, tpu.core_type = #tpu.core_type<tc>, window_params = [{transform_indices = @transform_0, window_bounds = array<i64: 16, 128>}, {transform_indices = @transform_1, window_bounds = array<i64: 128, 128>}, {transform_indices = @transform_2, window_bounds = array<i64: 16, 128>}, {transform_indices = @transform_3, window_bounds = array<i64: 16, 128>}]} {
    %c0_i32 = arith.constant 0 : i32
    %0 = arith.cmpi eq, %arg2, %c0_i32 : i32
    %1 = arith.extui %0 : i1 to i32
    %c0_i32_0 = arith.constant 0 : i32
    %2 = arith.cmpi ne, %1, %c0_i32_0 : i32
    scf.if %2 {
      %cst_10 = arith.constant 0.000000e+00 : f32
      %12 = vector.broadcast %cst_10 : f32 to vector<16x128xf32>
      %c0_11 = arith.constant 0 : index
      %c0_12 = arith.constant 0 : index
      %13 = vector.load %arg7[%c0_11, %c0_12] : memref<16x128xf32, #tpu.memory_space<vmem>>, vector<16x128xf32>
      tpu.vector_store %arg7[%c0_11, %c0_12], %12 {strides = array<i32>} : memref<16x128xf32, #tpu.memory_space<vmem>>, vector<16x128xf32>,
    } else {
    }
    %c0 = arith.constant 0 : index
    %c0_1 = arith.constant 0 : index
    %3 = vector.load %arg7[%c0, %c0_1] : memref<16x128xf32, #tpu.memory_space<vmem>>, vector<16x128xf32>
    %c0_2 = arith.constant 0 : index
    %c0_3 = arith.constant 0 : index
    %4 = vector.load %arg3[%c0_2, %c0_3] : memref<16x128xf32, #tpu.memory_space<vmem>>, vector<16x128xf32>
    %c0_4 = arith.constant 0 : index
    %c0_5 = arith.constant 0 : index
    %5 = vector.load %arg4[%c0_4, %c0_5] : memref<128x128xf32, #tpu.memory_space<vmem>>, vector<128x128xf32>
    %cst = arith.constant dense<0.000000e+00> : vector<16x128xf32>
    %6 = tpu.matmul %4, %5, %cst {dimension_numbers = #tpu.dot_dimension_numbers<[1], [1], [0], [0], [0, 0, 1, 0], [], []>} : vector<16x128xf32>, vector<128x128xf32>, vector<16x128xf32> -> vector<16x128xf32>
    %7 = arith.addf %3, %6 : vector<16x128xf32>
    %c0_6 = arith.constant 0 : index
    %c0_7 = arith.constant 0 : index
    %8 = vector.load %arg7[%c0_6, %c0_7] : memref<16x128xf32, #tpu.memory_space<vmem>>, vector<16x128xf32>
    tpu.vector_store %arg7[%c0_6, %c0_7], %7 {strides = array<i32>} : memref<16x128xf32, #tpu.memory_space<vmem>>, vector<16x128xf32>,
    %c0_i32_8 = arith.constant 0 : i32
    %9 = arith.cmpi eq, %arg2, %c0_i32_8 : i32
    %10 = arith.extui %9 : i1 to i32
    %c0_i32_9 = arith.constant 0 : i32
    %11 = arith.cmpi ne, %10, %c0_i32_9 : i32
    scf.if %11 {
      %c0_10 = arith.constant 0 : index
      %c0_11 = arith.constant 0 : index
      %12 = vector.load %arg7[%c0_10, %c0_11] : memref<16x128xf32, #tpu.memory_space<vmem>>, vector<16x128xf32>
      %c0_12 = arith.constant 0 : index
      %c0_13 = arith.constant 0 : index
      %13 = vector.load %arg5[%c0_12, %c0_13] : memref<16x128xf32, #tpu.memory_space<vmem>>, vector<16x128xf32>
      %14 = arith.addf %12, %13 : vector<16x128xf32>
      %c0_14 = arith.constant 0 : index
      %c0_15 = arith.constant 0 : index
      %15 = vector.load %arg6[%c0_14, %c0_15] : memref<16x128xf32, #tpu.memory_space<vmem>>, vector<16x128xf32>
      tpu.vector_store %arg6[%c0_14, %c0_15], %14 {strides = array<i32>} : memref<16x128xf32, #tpu.memory_space<vmem>>, vector<16x128xf32>,
    } else {
    }
    return
  }
  func.func @transform_0(%arg0: i32, %arg1: i32, %arg2: i32) -> (i32, i32) {
    %c0_i32 = arith.constant 0 : i32
    return %arg0, %arg2 : i32, i32
  }
  func.func @transform_1(%arg0: i32, %arg1: i32, %arg2: i32) -> (i32, i32) {
    %c0_i32 = arith.constant 0 : i32
    return %arg1, %arg2 : i32, i32
  }
  func.func @transform_2(%arg0: i32, %arg1: i32, %arg2: i32) -> (i32, i32) {
    %c0_i32 = arith.constant 0 : i32
    return %arg0, %arg1 : i32, i32
  }
  func.func @transform_3(%arg0: i32, %arg1: i32, %arg2: i32) -> (i32, i32) {
    %c0_i32 = arith.constant 0 : i32
    return %arg0, %arg1 : i32, i32
  }
}

</mosaic_0001>

<llo_original>
// kernel: tpu_custom_call.1
$region0: #{tpu_custom_call.1}
  #allocation0 [shape = 'u32[]', space=smem, size = 0x4, offset = 0x4, fixed_abs, tag = 'smem constant byte address 0x4 - core index']
  #allocation1 [shape = 'u32[144,128]{1,0:T(1,128)}', space=vmem, size = 0x12000, scoped, tag = 'internal scratch']
  #allocation2 [shape = 'f32[16,128]{1,0:T(8,128)}', space=vmem, size = 0x2000, scoped, tag = 'scratch operand']
  %s0 = inlined_call_operand.hbm [shape: f32[16,128], index: 0, kind: input, shape index: {}]
  %s1 = inlined_call_operand.hbm [shape: f32[128,128], index: 1, kind: input, shape index: {}]
  %s2 = inlined_call_operand.hbm [shape: f32[16,128], index: 2, kind: input, shape index: {}]
  %s3 = inlined_call_operand.hbm [shape: f32[16,128], index: 3, kind: output, shape index: {}]
  %s4 = sld [smem:[#allocation0]]
  $region42: #{tpu_custom_call.1} parent=0
    _
  %s6 = ssub.s32 1, %s4
  %s7 = scalar_select 0, %s6, %s4
  $region1: #{tpu_custom_call.1} parent=0
    #allocation3 [shape = 'u8[8192]{0}', space=vmem, size = 0x2000, scoped, tag = 'input window, operand 0, single buffered']
    #allocation4 [shape = 's32[1]{0}', space=sflag, size = 0x4, scoped, tag = 'scoped memory for tpu_custom_call.1']
    #allocation5 [shape = 's32[1]{0}', space=sflag, size = 0x4, scoped, tag = 'scoped memory for tpu_custom_call.1']
    #allocation6 [shape = 'u8[65536]{0}', space=vmem, size = 0x10000, scoped, tag = 'input window, operand 1, single buffered']
    #allocation7 [shape = 's32[1]{0}', space=sflag, size = 0x4, scoped, tag = 'scoped memory for tpu_custom_call.1']
    #allocation8 [shape = 'u8[8192]{0}', space=vmem, size = 0x2000, scoped, tag = 'input window, operand 2, single buffered']
    #allocation9 [shape = 'u8[8192]{0}', space=vmem, size = 0x2000, scoped, tag = 'output window, operand 0, single buffered']
    %8 = vsyncpa [#allocation4], 0
    %9 = vsyncpa [#allocation7], 0
    %10 = vsyncpa [#allocation5], 0
    // Predicated region
    $region2: #{tpu_custom_call.1} parent=1 // pred_check
      _
    $region3: #{tpu_custom_call.1} parent=1 // pred_check_branch
      %12 = sbr.rel (0) target = $region5
    $region4: #{tpu_custom_call.1} parent=1 // pred_region
      %s14 = ssub.s32 256, 256
      %15 = vsyncadd [#allocation4], %s14
      %s16 = sshll.u32 [#allocation3], 4
      %s17 = int_to_ptr.vmem [resolvable:$true] %s16
      %22 = dma.hbm_to_vmem [thread:$0]  %s0, 256, %s17, [#allocation4], 128, 128, 8
    $region5: #{tpu_custom_call.1} parent=1 // pred_fallthru
      _
    // Predicated region
    $region6: #{tpu_custom_call.1} parent=1 // pred_check
      _
    $region7: #{tpu_custom_call.1} parent=1 // pred_check_branch
      %24 = sbr.rel (0) target = $region9
    $region8: #{tpu_custom_call.1} parent=1 // pred_region
      %s26 = ssub.s32 2048, 2048
      %27 = vsyncadd [#allocation7], %s26
      %s28 = sshll.u32 [#allocation6], 4
      %s29 = int_to_ptr.vmem [resolvable:$true] %s28
      %34 = dma.hbm_to_vmem [thread:$0]  %s1, 2048, %s29, [#allocation7], 128, 128, 8
    $region9: #{tpu_custom_call.1} parent=1 // pred_fallthru
      _
    // Predicated region
    $region10: #{tpu_custom_call.1} parent=1 // pred_check
      _
    $region11: #{tpu_custom_call.1} parent=1 // pred_check_branch
      %36 = sbr.rel (0) target = $region13
    $region12: #{tpu_custom_call.1} parent=1 // pred_region
      %s38 = ssub.s32 256, 256
      %39 = vsyncadd [#allocation7], %s38
      %s40 = sshll.u32 [#allocation8], 4
      %s41 = int_to_ptr.vmem [resolvable:$true] %s40
      %46 = dma.hbm_to_vmem [thread:$0]  %s2, 256, %s41, [#allocation7], 128, 128, 8
    $region13: #{tpu_custom_call.1} parent=1 // pred_fallthru
      _
    // Predicated region
    $region14: #{tpu_custom_call.1} parent=1 // pred_check
      _
    $region15: #{tpu_custom_call.1} parent=1 // pred_check_branch
      %48 = sbr.rel (0) target = $region17
    $region16: #{tpu_custom_call.1} parent=1 // pred_region
      %49 = dma.done [#allocation4], 256
    $region17: #{tpu_custom_call.1} parent=1 // pred_fallthru
      _
    // Predicated region
    $region18: #{tpu_custom_call.1} parent=1 // pred_check
      _
    $region19: #{tpu_custom_call.1} parent=1 // pred_check_branch
      %51 = sbr.rel (0) target = $region21
    $region20: #{tpu_custom_call.1} parent=1 // pred_region
      %52 = dma.done [#allocation7], 2048
    $region21: #{tpu_custom_call.1} parent=1 // pred_fallthru
      _
    // Predicated region
    $region22: #{tpu_custom_call.1} parent=1 // pred_check
      _
    $region23: #{tpu_custom_call.1} parent=1 // pred_check_branch
      %54 = sbr.rel (0) target = $region25
    $region24: #{tpu_custom_call.1} parent=1 // pred_region
      %55 = dma.done [#allocation7], 256
    $region25: #{tpu_custom_call.1} parent=1 // pred_fallthru
      _
    %p56 = scmp.eq.s32.totalorder 0, 0
    // Predicated region
    $region26: #{tpu_custom_call.1} parent=1 // pred_check
      %p57 = pneg %p56
    $region27: #{tpu_custom_call.1} parent=1 // pred_check_branch
      %59 = sbr.rel (%p57) target = $region29
    $region28: #{tpu_custom_call.1} parent=1 // pred_region
      %60 = vst [vmem:[#allocation2] sm:$0xff] 0.0
      %61 = vst [vmem:[#allocation2 + $0x8] sm:$0xff] 0.0
    $region29: #{tpu_custom_call.1} parent=1 // pred_fallthru
      _
    %v62 = vld [vmem:[#allocation2] sm:$0xff]
    %v63 = vld [vmem:[#allocation2 + $0x8] sm:$0xff]
    %v64 = vld [vmem:[#allocation3] sm:$0xff]
    %v65 = vld [vmem:[#allocation3 + $0x8] sm:$0xff]
    %v66 = vld [vmem:[#allocation6] sm:$0xff]
    %v67 = vld [vmem:[#allocation6 + $0x8] sm:$0xff]
    %v68 = vld [vmem:[#allocation6 + $0x10] sm:$0xff]
    %v69 = vld [vmem:[#allocation6 + $0x18] sm:$0xff]
    %v70 = vld [vmem:[#allocation6 + $0x20] sm:$0xff]
    %v71 = vld [vmem:[#allocation6 + $0x28] sm:$0xff]
    %v72 = vld [vmem:[#allocation6 + $0x30] sm:$0xff]
    %v73 = vld [vmem:[#allocation6 + $0x38] sm:$0xff]
    %v74 = vld [vmem:[#allocation6 + $0x40] sm:$0xff]
    %v75 = vld [vmem:[#allocation6 + $0x48] sm:$0xff]
    %v76 = vld [vmem:[#allocation6 + $0x50] sm:$0xff]
    %v77 = vld [vmem:[#allocation6 + $0x58] sm:$0xff]
    %v78 = vld [vmem:[#allocation6 + $0x60] sm:$0xff]
    %v79 = vld [vmem:[#allocation6 + $0x68] sm:$0xff]
    %v80 = vld [vmem:[#allocation6 + $0x70] sm:$0xff]
    %v81 = vld [vmem:[#allocation6 + $0x78] sm:$0xff]
    %82 = vmatprep.subr.mxu0 0.0
    %83 = vmatpush1.xpose.msra.mxu0 %v66
    %84 = vmatprep.subr.mxu0 0.0
    %85 = vmatpush1.xpose.msra.mxu0 %v67
    %86 = vmatprep.subr.mxu0 0.0
    %87 = vmatpush1.xpose.msra.mxu0 %v68
    %88 = vmatprep.subr.mxu0 0.0
    %89 = vmatpush1.xpose.msra.mxu0 %v69
    %90 = vmatprep.subr.mxu0 0.0
    %91 = vmatpush1.xpose.msra.mxu0 %v70
    %92 = vmatprep.subr.mxu0 0.0
    %93 = vmatpush1.xpose.msra.mxu0 %v71
    %94 = vmatprep.subr.mxu0 0.0
    %95 = vmatpush1.xpose.msra.mxu0 %v72
    %96 = vmatprep.subr.mxu0 0.0
    %97 = vmatpush1.xpose.msra.mxu0 %v73
    %98 = vmatprep.subr.mxu0 0.0
    %99 = vmatpush1.xpose.msra.mxu0 %v74
    %100 = vmatprep.subr.mxu0 0.0
    %101 = vmatpush1.xpose.msra.mxu0 %v75
    %102 = vmatprep.subr.mxu0 0.0
    %103 = vmatpush1.xpose.msra.mxu0 %v76
    %104 = vmatprep.subr.mxu0 0.0
    %105 = vmatpush1.xpose.msra.mxu0 %v77
    %106 = vmatprep.subr.mxu0 0.0
    %107 = vmatpush1.xpose.msra.mxu0 %v78
    %108 = vmatprep.subr.mxu0 0.0
    %109 = vmatpush1.xpose.msra.mxu0 %v79
    %110 = vmatprep.subr.mxu0 0.0
    %111 = vmatpush1.xpose.msra.mxu0 %v80
    %112 = vmatprep.subr.mxu0 0.0
    %113 = vmatpush1.xpose.msra.mxu0 %v81
    %114 = vmatprep.subr.mxu0 0.0
    %115 = vmatpush1.xpose.msra.mxu0 0.0
    %116 = vmatprep.subr.mxu0 0.0
    %117 = vmatpush1.xpose.msra.mxu0 0.0
    %118 = vmatprep.subr.mxu0 0.0
    %119 = vmatpush1.xpose.msra.mxu0 0.0
    %120 = vmatprep.subr.mxu0 0.0
    %121 = vmatpush1.xpose.msra.mxu0 0.0
    %122 = vmatprep.subr.mxu0 0.0
    %123 = vmatpush1.xpose.msra.mxu0 0.0
    %124 = vmatprep.subr.mxu0 0.0
    %125 = vmatpush1.xpose.msra.mxu0 0.0
    %126 = vmatprep.subr.mxu0 0.0
    %127 = vmatpush1.xpose.msra.mxu0 0.0
    %128 = vmatprep.subr.mxu0 0.0
    %129 = vmatpush1.xpose.msra.mxu0 0.0
    %130 = vmatprep.subr.mxu0 0.0
    %131 = vmatpush1.xpose.msra.mxu0 0.0
    %132 = vmatprep.subr.mxu0 0.0
    %133 = vmatpush1.xpose.msra.mxu0 0.0
    %134 = vmatprep.subr.mxu0 0.0
    %135 = vmatpush1.xpose.msra.mxu0 0.0
    %136 = vmatprep.subr.mxu0 0.0
    %137 = vmatpush1.xpose.msra.mxu0 0.0
    %138 = vmatprep.subr.mxu0 0.0
    %139 = vmatpush1.xpose.msra.mxu0 0.0
    %140 = vmatprep.subr.mxu0 0.0
    %141 = vmatpush1.xpose.msra.mxu0 0.0
    %142 = vmatprep.subr.mxu0 0.0
    %143 = vmatpush1.xpose.msra.mxu0 0.0
    %144 = vmatprep.subr.mxu0 0.0
    %145 = vmatpush1.xpose.msra.mxu0 0.0
    %146 = vmatprep.mubr.f32.mxu0 0.0
    %147 = vmatmul.mubr.f32.gmra.mrb[0].mxu0 %v64
    %v148 = vpop.f32.mrb[0].mxu0
    %v149 = vadd.f32 0.0, %v148
    %v150 = vpop.f32.mrb[0].mxu0
    %151 = vmatprep.mubr.f32.mxu0 0.0
    %152 = vmatmul.mubr.f32.gmra.mrb[0].mxu0 %v65
    %v153 = vpop.f32.mrb[0].mxu0
    %v154 = vadd.f32 0.0, %v153
    %v155 = vpop.f32.mrb[0].mxu0
    %156 = vdwg.mxu0
    %v157 = vadd.f32 %v62, %v149
    %v158 = vadd.f32 %v63, %v154
    %159 = vst [vmem:[#allocation2] sm:$0xff] %v157
    %160 = vst [vmem:[#allocation2 + $0x8] sm:$0xff] %v158
    // Predicated region
    $region30: #{tpu_custom_call.1} parent=1 // pred_check
      %p161 = pneg %p56
    $region31: #{tpu_custom_call.1} parent=1 // pred_check_branch
      %163 = sbr.rel (%p161) target = $region33
    $region32: #{tpu_custom_call.1} parent=1 // pred_region
      %v164 = vld [vmem:[#allocation2] sm:$0xff]
      %v165 = vld [vmem:[#allocation2 + $0x8] sm:$0xff]
      %v166 = vld [vmem:[#allocation8] sm:$0xff]
      %v167 = vld [vmem:[#allocation8 + $0x8] sm:$0xff]
      %v168 = vadd.f32 %v164, %v166
      %v169 = vadd.f32 %v165, %v167
      %170 = vst [vmem:[#allocation9] sm:$0xff] %v168
      %171 = vst [vmem:[#allocation9 + $0x8] sm:$0xff] %v169
    $region33: #{tpu_custom_call.1} parent=1 // pred_fallthru
      _
    // Predicated region
    $region34: #{tpu_custom_call.1} parent=1 // pred_check
      _
    $region35: #{tpu_custom_call.1} parent=1 // pred_check_branch
      %173 = sbr.rel (0) target = $region37
    $region36: #{tpu_custom_call.1} parent=1 // pred_region
      %s175 = ssub.s32 256, 256
      %176 = vsyncadd [#allocation5], %s175
      %s177 = sshll.u32 [#allocation9], 4
      %s178 = int_to_ptr.vmem [resolvable:$true] %s177
      %183 = dma.vmem_to_hbm [thread:$0]  %s178, 256, %s3, [#allocation5], 128, 128, 8
    $region37: #{tpu_custom_call.1} parent=1 // pred_fallthru
      _
    // Predicated region
    $region38: #{tpu_custom_call.1} parent=1 // pred_check
      _
    $region39: #{tpu_custom_call.1} parent=1 // pred_check_branch
      %185 = sbr.rel (0) target = $region41
    $region40: #{tpu_custom_call.1} parent=1 // pred_region
      %186 = dma.done [#allocation5], 256
    $region41: #{tpu_custom_call.1} parent=1 // pred_fallthru
      _
    %187 = vsyncpa [#allocation4], 1
    %188 = vsyncpa [#allocation7], 1
    %189 = vsyncpa [#allocation5], 1

</llo_original>
